<compile_context>
chip_gen: v5e
topology: v5e:2x2
jax: 0.10.0
libtpu: 0.0.40
codegen_flags: <defaults>
</compile_context>

<pallas_src>
import math

import jax
import jax.numpy as jnp
from jax.experimental import pallas as pl
from jax.experimental.pallas import tpu as pltpu

PROXIMAL_SURFACE = 0.4
MAX_QUERIES = 256          # scaled-down self.max_queries (=80000 in the module)
DELTA = 0.2
CLAMP_T = 1e-4

# Deterministic "parameter" from __init__ (self.matrix_rot), a pure permutation.
MATRIX_ROT = ((0.0, 1.0, 0.0, 0.0),
              (0.0, 0.0, 1.0, 0.0),
              (1.0, 0.0, 0.0, 0.0),
              (0.0, 0.0, 0.0, 1.0))


def _affine_row(x, y, z, row):
    """Trace-time constant-folded  a*x + b*y + c*z + d  (skips 0.0 / 1.0)."""
    a, b, c, d = (float(v) for v in row)
    acc = None
    for coef, v in ((a, x), (b, y), (c, z)):
        if coef == 0.0:
            continue
        term = v if coef == 1.0 else coef * v
        acc = term if acc is None else acc + term
    if d != 0.0:
        acc = jnp.full_like(x, d) if acc is None else acc + d
    if acc is None:
        acc = jnp.zeros_like(x)
    return acc


# --------------------- fused transform + occupancy + CE kernel ---------------
def shape_loss_type0(sel_xyz, sel_sig, matrix_rot, *, delta=DELTA,
                     max_tile_rows=1024):
    """Fused type0 ShapeLoss over already-selected (gathered) points.

    sel_xyz: (M, 3) float  selected points (pre-transform)
    sel_sig: (M,)   float  selected sigmas
    """
    m = int(sel_xyz.shape[0])
    lane = 128
    rows = -(-m // lane)                                   # ceil(m / 128)
    tile_rows = min(max_tile_rows, ((rows + 7) // 8) * 8)  # multiple of 8
    rows_pad = -(-rows // tile_rows) * tile_rows
    pad = rows_pad * lane - m

    # Pack [x, y, z, sigma] into lane-dense channel planes: (4, rows_pad, 128).
    data = jnp.concatenate(
        [sel_xyz.astype(jnp.float32), sel_sig.astype(jnp.float32)[:, None]],
        axis=1)                                            # (m, 4)
    data = jnp.pad(data, ((0, pad), (0, 0)))               # zero-pad tail rows
    data = data.T.reshape(4, rows_pad, lane)

    # Compile-time constants (transform matrix rows 0..2, CE log constants).
    rot = tuple(tuple(float(v) for v in row) for row in matrix_rot)
    log_t = math.log(CLAMP_T)              # log(1e-4)
    log_1mt = math.log(1.0 - CLAMP_T)      # log(1 - 1e-4)
    # ce = -(p*log_q + (1-p)*log_1mq), logs are +/- constants for binary q:
    #   ind:   ce = -log_t  - p * (log_1mt - log_t) = C1 - p*D
    #   !ind:  ce = -log_1mt + p * (log_1mt - log_t) = C2 + p*D
    big_d = log_1mt - log_t
    c1 = -log_t
    c2 = -log_1mt
    neg_delta = -float(delta)

    def kernel(data_ref, out_ref, acc_ref):
        i = pl.program_id(0)

        @pl.when(i == 0)
        def _init():
            acc_ref[...] = jnp.zeros_like(acc_ref)

        x = data_ref[0]
        y = data_ref[1]
        z = data_ref[2]
        sig = data_ref[3]

        # transform(pcd, trans): p' = trans[:3] @ [x, y, z, 1]
        # (constant-folded VPU chains; for the permutation matrix these are
        # pure lane copies with no arithmetic at all)
        px = _affine_row(x, y, z, rot[0])
        py = _affine_row(x, y, z, rot[1])
        pz = _affine_row(x, y, z, rot[2])

        # TODO(synk): the real COAP SMPL occupancy network has no Pallas
        # equivalent; replaced by an analytic sphere occupancy
        # coap_occ = sigmoid(8 * (0.25 - |p|^2)).  type0 only needs the
        # indicator (coap_occ > 0.5) <=> (|p|^2 < 0.25) (sigmoid is monotone).
        r2 = px * px + py * py + pz * pz
        ind = r2 < 0.25

        # nerf_occ = clamp(1 - exp(-delta * sigma), 0, 1.1)   (exp -> EUP)
        nerf_occ = jnp.clip(1.0 - jnp.exp(neg_delta * sig), 0.0, 1.1)

        # Binary-indicator cross-entropy: one mul + one select.
        t = nerf_occ * big_d
        ce = jnp.where(ind, c1 - t, c2 + t)

        # Zero the padded tail (flat element index >= m) with an iota compare.
        row_id = jax.lax.broadcasted_iota(jnp.int32, (tile_rows, lane), 0)
        lane_id = jax.lax.broadcasted_iota(jnp.int32, (tile_rows, lane), 1)
        flat = i * (tile_rows * lane) + row_id * lane + lane_id
        ce = jnp.where(flat < m, ce, 0.0)

        acc_ref[...] += ce                                 # elementwise VPU accum

        @pl.when(i == pl.num_programs(0) - 1)
        def _finalize():
            out_ref[...] = jnp.sum(acc_ref[...], keepdims=True)

    out = pl.pallas_call(
        kernel,
        out_shape=jax.ShapeDtypeStruct((1, 1), jnp.float32),
        grid_spec=pltpu.PrefetchScalarGridSpec(
            num_scalar_prefetch=0,
            grid=(rows_pad // tile_rows,),
            in_specs=[pl.BlockSpec((4, tile_rows, lane), lambda i: (0, i, 0))],
            out_specs=pl.BlockSpec((1, 1), lambda i: (0, 0)),
            scratch_shapes=[pltpu.VMEM((tile_rows, lane), jnp.float32)],
        ),
        compiler_params=pltpu.CompilerParams(
            dimension_semantics=("arbitrary",)),
    )(data)
    return out[0, 0]


# ---------------------------- ShapeLoss wrapper -----------------------------
class ShapeLoss:
    """type0 path of the original nn.Module (model / mesh pieces stubbed)."""

    def __init__(self, matrix_rot=MATRIX_ROT):
        self.proximal_surface = PROXIMAL_SURFACE
        self.max_queries = MAX_QUERIES
        self.delta = DELTA
        self.matrix_rot = matrix_rot

    def forward(self, key, xyzs_, sigmas, type="type0"):
        # TODO(synk): type1/type2/type3 need boolean-masked dynamic subsets and
        # the mesh-based gaussian_weighted_distance weights (point-to-mesh
        # distance has no Pallas equivalent); only type0 here, where weight is
        # not applied (ce_pq_loss is called with weight=None).
        assert type == "type0"
        n = xyzs_.shape[0]
        rand_mask = jax.random.permutation(key, n)[: self.max_queries]
        # Gather BEFORE the transform: only max_queries points reach the kernel.
        sel_xyz = jnp.take(xyzs_, rand_mask, axis=0)
        sel_sig = jnp.take(sigmas, rand_mask, axis=0)
        return shape_loss_type0(sel_xyz, sel_sig, self.matrix_rot,
                                delta=self.delta)


# ------------------------------ pure-JAX reference ---------------------------
def _ref_loss(key, xyzs_, sigmas, matrix_rot=MATRIX_ROT,
              max_queries=MAX_QUERIES, delta=DELTA):
    mat = jnp.asarray(matrix_rot, jnp.float32)
    ones = jnp.ones((xyzs_.shape[0], 1), jnp.float32)
    pcd = jnp.concatenate([xyzs_.astype(jnp.float32), ones], axis=1)
    xyzs = (mat @ pcd.T)[:-1, :].T                         # original transform()
    rand_mask = jax.random.permutation(key, xyzs_.shape[0])[:max_queries]
    pts = xyzs[rand_mask]
    coap_occ = jax.nn.sigmoid(8.0 * (0.25 - jnp.sum(pts * pts, axis=-1)))
    indicator = (coap_occ > 0.5).astype(jnp.float32)
    nerf_occ = jnp.clip(1.0 - jnp.exp(-delta * sigmas), 0.0, 1.1)
    p = nerf_occ[rand_mask]
    q = indicator
    q_c = jnp.clip(q, CLAMP_T, 1.0 - CLAMP_T)
    one_m_q_c = jnp.clip(1.0 - q, CLAMP_T, 1.0 - CLAMP_T)
    ce = -(p * jnp.log(q_c) + (1.0 - p) * jnp.log(one_m_q_c))
    return ce.sum()


if __name__ == "__main__":
    key = jax.random.PRNGKey(0)
    k_xyz, k_sig, k_perm = jax.random.split(key, 3)
    N = 512
    xyzs_ = jax.random.normal(k_xyz, (N, 3), jnp.float32) * 0.5
    sigmas = jax.random.uniform(k_sig, (N,), jnp.float32, minval=0.0,
                                maxval=10.0)

    shape_loss = ShapeLoss()
    loss = jax.block_until_ready(shape_loss.forward(k_perm, xyzs_, sigmas,
                                                    "type0"))
    ref = jax.block_until_ready(_ref_loss(k_perm, xyzs_, sigmas))
    assert jnp.allclose(loss, ref, rtol=1e-4, atol=1e-4), (loss, ref)
    print("KERNEL_OK")
</pallas_src>

<mosaic_0001>
module attributes {stable_mosaic.version = 11 : i64} {
  func.func @kernel(%arg0: i32, %arg1: memref<4x8x128xf32, #tpu.memory_space<vmem>>, %arg2: memref<1x1xf32, #tpu.memory_space<vmem>>, %arg3: memref<8x128xf32, #tpu.memory_space<vmem>>) attributes {dimension_semantics = [#tpu.dimension_semantics<arbitrary>], iteration_bounds = array<i64: 1>, scalar_prefetch = 0 : i64, scratch_operands = 1 : i64, tpu.core_type = #tpu.core_type<tc>, window_params = [{transform_indices = @transform_0, window_bounds = array<i64: 4, 8, 128>}, {pipeline_mode = #tpu.pipeline_mode<synchronous>, transform_indices = @transform_1, window_bounds = array<i64: 1, 1>}]} {
    %c0_i32 = arith.constant 0 : i32
    %0 = arith.cmpi eq, %arg0, %c0_i32 : i32
    %1 = arith.extui %0 : i1 to i32
    %c0_i32_0 = arith.constant 0 : i32
    %2 = arith.cmpi ne, %1, %c0_i32_0 : i32
    scf.if %2 {
      %cst_23 = arith.constant 0.000000e+00 : f32
      %52 = vector.broadcast %cst_23 : f32 to vector<8x128xf32>
      %c0_24 = arith.constant 0 : index
      %c0_25 = arith.constant 0 : index
      %53 = vector.load %arg3[%c0_24, %c0_25] : memref<8x128xf32, #tpu.memory_space<vmem>>, vector<8x128xf32>
      tpu.vector_store %arg3[%c0_24, %c0_25], %52 {strides = array<i32>} : memref<8x128xf32, #tpu.memory_space<vmem>>, vector<8x128xf32>,
    } else {
    }
    %c0 = arith.constant 0 : index
    %c0_1 = arith.constant 0 : index
    %c0_2 = arith.constant 0 : index
    %3 = vector.load %arg1[%c0, %c0_1, %c0_2] : memref<4x8x128xf32, #tpu.memory_space<vmem>>, vector<1x8x128xf32>
    %4 = vector.shape_cast %3 : vector<1x8x128xf32> to vector<8x128xf32>
    %c1 = arith.constant 1 : index
    %c0_3 = arith.constant 0 : index
    %c0_4 = arith.constant 0 : index
    %5 = vector.load %arg1[%c1, %c0_3, %c0_4] : memref<4x8x128xf32, #tpu.memory_space<vmem>>, vector<1x8x128xf32>
    %6 = vector.shape_cast %5 : vector<1x8x128xf32> to vector<8x128xf32>
    %c2 = arith.constant 2 : index
    %c0_5 = arith.constant 0 : index
    %c0_6 = arith.constant 0 : index
    %7 = vector.load %arg1[%c2, %c0_5, %c0_6] : memref<4x8x128xf32, #tpu.memory_space<vmem>>, vector<1x8x128xf32>
    %8 = vector.shape_cast %7 : vector<1x8x128xf32> to vector<8x128xf32>
    %c3 = arith.constant 3 : index
    %c0_7 = arith.constant 0 : index
    %c0_8 = arith.constant 0 : index
    %9 = vector.load %arg1[%c3, %c0_7, %c0_8] : memref<4x8x128xf32, #tpu.memory_space<vmem>>, vector<1x8x128xf32>
    %10 = vector.shape_cast %9 : vector<1x8x128xf32> to vector<8x128xf32>
    %11 = arith.mulf %6, %6 : vector<8x128xf32>
    %12 = arith.mulf %8, %8 : vector<8x128xf32>
    %13 = arith.addf %11, %12 : vector<8x128xf32>
    %14 = arith.mulf %4, %4 : vector<8x128xf32>
    %15 = arith.addf %13, %14 : vector<8x128xf32>
    %cst = arith.constant 2.500000e-01 : f32
    %16 = vector.broadcast %cst : f32 to vector<8x128xf32>
    %17 = arith.cmpf olt, %15, %16 : vector<8x128xf32>
    %cst_9 = arith.constant -2.000000e-01 : f32
    %18 = vector.broadcast %cst_9 : f32 to vector<8x128xf32>
    %19 = arith.mulf %18, %10 : vector<8x128xf32>
    %20 = math.exp %19 : vector<8x128xf32>
    %cst_10 = arith.constant 1.000000e+00 : f32
    %21 = vector.broadcast %cst_10 : f32 to vector<8x128xf32>
    %22 = arith.subf %21, %20 : vector<8x128xf32>
    %cst_11 = arith.constant 0.000000e+00 : f32
    %cst_12 = arith.constant 1.100000e+00 : f32
    %23 = vector.broadcast %cst_11 : f32 to vector<8x128xf32>
    %24 = arith.maximumf %23, %22 : vector<8x128xf32>
    %25 = vector.broadcast %cst_12 : f32 to vector<8x128xf32>
    %26 = arith.minimumf %25, %24 : vector<8x128xf32>
    %cst_13 = arith.constant 9.210240e+00 : f32
    %27 = vector.broadcast %cst_13 : f32 to vector<8x128xf32>
    %28 = arith.mulf %26, %27 : vector<8x128xf32>
    %cst_14 = arith.constant 9.21034049 : f32
    %29 = vector.broadcast %cst_14 : f32 to vector<8x128xf32>
    %30 = arith.subf %29, %28 : vector<8x128xf32>
    %cst_15 = arith.constant 1.000050e-04 : f32
    %31 = vector.broadcast %cst_15 : f32 to vector<8x128xf32>
    %32 = arith.addf %31, %28 : vector<8x128xf32>
    %33 = arith.select %17, %30, %32 : vector<8x128xi1>, vector<8x128xf32>
    %34 = tpu.iota {dimensions = array<i32: 0>} : vector<8x128xi32>
    %35 = tpu.iota {dimensions = array<i32: 1>} : vector<8x128xi32>
    %c1024_i32 = arith.constant 1024 : i32
    %36 = arith.muli %arg0, %c1024_i32 : i32
    %c128_i32 = arith.constant 128 : i32
    %37 = vector.broadcast %c128_i32 : i32 to vector<8x128xi32>
    %38 = arith.muli %34, %37 : vector<8x128xi32>
    %39 = vector.broadcast %36 : i32 to vector<8x128xi32>
    %40 = arith.addi %39, %38 : vector<8x128xi32>
    %41 = arith.addi %40, %35 : vector<8x128xi32>
    %c256_i32 = arith.constant 256 : i32
    %42 = vector.broadcast %c256_i32 : i32 to vector<8x128xi32>
    %43 = arith.cmpi slt, %41, %42 : vector<8x128xi32>
    %cst_16 = arith.constant 0.000000e+00 : f32
    %44 = vector.broadcast %cst_16 : f32 to vector<8x128xf32>
    %45 = arith.select %43, %33, %44 : vector<8x128xi1>, vector<8x128xf32>
    %c0_17 = arith.constant 0 : index
    %c0_18 = arith.constant 0 : index
    %46 = vector.load %arg3[%c0_17, %c0_18] : memref<8x128xf32, #tpu.memory_space<vmem>>, vector<8x128xf32>
    %47 = arith.addf %46, %45 : vector<8x128xf32>
    %c0_19 = arith.constant 0 : index
    %c0_20 = arith.constant 0 : index
    %48 = vector.load %arg3[%c0_19, %c0_20] : memref<8x128xf32, #tpu.memory_space<vmem>>, vector<8x128xf32>
    tpu.vector_store %arg3[%c0_19, %c0_20], %47 {strides = array<i32>} : memref<8x128xf32, #tpu.memory_space<vmem>>, vector<8x128xf32>,
    %c0_i32_21 = arith.constant 0 : i32
    %49 = arith.cmpi eq, %arg0, %c0_i32_21 : i32
    %50 = arith.extui %49 : i1 to i32
    %c0_i32_22 = arith.constant 0 : i32
    %51 = arith.cmpi ne, %50, %c0_i32_22 : i32
    scf.if %51 {
      %c0_23 = arith.constant 0 : index
      %c0_24 = arith.constant 0 : index
      %52 = vector.load %arg3[%c0_23, %c0_24] : memref<8x128xf32, #tpu.memory_space<vmem>>, vector<8x128xf32>
      %53 = vector.shape_cast %52 : vector<8x128xf32> to vector<1x8x128xf32>
      %cst_25 = arith.constant dense<0.000000e+00> : vector<1xf32>
      %54 = vector.multi_reduction <add>, %53, %cst_25 [1, 2] : vector<1x8x128xf32> to vector<1xf32>
      %55 = vector.shape_cast %54 : vector<1xf32> to vector<1x1x1xf32>
      %56 = vector.extract %55[0, 0, 0] : f32 from vector<1x1x1xf32>
      %57 = vector.broadcast %56 : f32 to vector<1x1xf32>
      %c0_26 = arith.constant 0 : index
      %c0_27 = arith.constant 0 : index
      %58 = vector.load %arg2[%c0_26, %c0_27] : memref<1x1xf32, #tpu.memory_space<vmem>>, vector<1x1xf32>
      tpu.vector_store %arg2[%c0_26, %c0_27], %57 {strides = array<i32>} : memref<1x1xf32, #tpu.memory_space<vmem>>, vector<1x1xf32>,
    } else {
    }
    return
  }
  func.func @transform_0(%arg0: i32) -> (i32, i32, i32) {
    %c0_i32 = arith.constant 0 : i32
    %c0_i32_0 = arith.constant 0 : i32
    %c0_i32_1 = arith.constant 0 : i32
    return %c0_i32, %arg0, %c0_i32_0 : i32, i32, i32
  }
  func.func @transform_1(%arg0: i32) -> (i32, i32) {
    %c0_i32 = arith.constant 0 : i32
    %c0_i32_0 = arith.constant 0 : i32
    %c0_i32_1 = arith.constant 0 : i32
    return %c0_i32, %c0_i32_0 : i32, i32
  }
}

</mosaic_0001>

<llo_original>
// kernel: tpu_custom_call.1
$region0: #{tpu_custom_call.1}
  #allocation0 [shape = 'u32[]', space=smem, size = 0x4, offset = 0x4, fixed_abs, tag = 'smem constant byte address 0x4 - core index']
  #allocation1 [shape = 'u32[72,128]{1,0:T(1,128)}', space=vmem, size = 0x9000, scoped, tag = 'internal scratch']
  #allocation2 [shape = 'f32[8,128]{1,0:T(8,128)}', space=vmem, size = 0x1000, scoped, tag = 'scratch operand']
  %s0 = inlined_call_operand.hbm [shape: f32[4,8,128], index: 0, kind: input, shape index: {}]
  %s1 = inlined_call_operand.hbm [shape: f32[1,1], index: 1, kind: output, shape index: {}]
  %s2 = sld [smem:[#allocation0]]
  $region26: #{tpu_custom_call.1} parent=0
    _
  %s4 = ssub.s32 1, %s2
  %s5 = scalar_select 0, %s4, %s2
  $region1: #{tpu_custom_call.1} parent=0
    #allocation3 [shape = 'u8[16384]{0}', space=vmem, size = 0x4000, scoped, tag = 'input window, operand 0, single buffered']
    #allocation4 [shape = 's32[1]{0}', space=sflag, size = 0x4, scoped, tag = 'scoped memory for tpu_custom_call.1']
    #allocation5 [shape = 's32[1]{0}', space=sflag, size = 0x4, scoped, tag = 'scoped memory for tpu_custom_call.1']
    #allocation6 [shape = 'u8[512]{0}', space=vmem, size = 0x400, scoped, tag = 'output window, operand 0, single buffered']
    %6 = vsyncpa [#allocation4], 0
    %7 = vsyncpa [#allocation5], 0
    // Predicated region
    $region2: #{tpu_custom_call.1} parent=1 // pred_check
      _
    $region3: #{tpu_custom_call.1} parent=1 // pred_check_branch
      %9 = sbr.rel (0) target = $region5
    $region4: #{tpu_custom_call.1} parent=1 // pred_region
      %11 = vsyncadd [#allocation4], 0
      %s12 = sshll.u32 %s0, 4
      %s13 = int_to_ptr.hbm [resolvable:$true] %s12
      %s14 = sshll.u32 [#allocation3], 4
      %s15 = int_to_ptr.vmem [resolvable:$true] %s14
      %20 = dma.hbm_to_vmem [thread:$0]  %s13, 512, %s15, [#allocation4], 128, 128, 8
    $region5: #{tpu_custom_call.1} parent=1 // pred_fallthru
      _
    // Predicated region
    $region6: #{tpu_custom_call.1} parent=1 // pred_check
      _
    $region7: #{tpu_custom_call.1} parent=1 // pred_check_branch
      %22 = sbr.rel (0) target = $region9
    $region8: #{tpu_custom_call.1} parent=1 // pred_region
      %24 = dma.done [#allocation4], 512
    $region9: #{tpu_custom_call.1} parent=1 // pred_fallthru
      _
    %p25 = scmp.eq.s32.totalorder 0, 0
    // Predicated region
    $region10: #{tpu_custom_call.1} parent=1 // pred_check
      %p26 = pneg %p25
    $region11: #{tpu_custom_call.1} parent=1 // pred_check_branch
      %28 = sbr.rel (%p26) target = $region13
    $region12: #{tpu_custom_call.1} parent=1 // pred_region
      %29 = vst [vmem:[#allocation2] sm:$0xff] 0.0
    $region13: #{tpu_custom_call.1} parent=1 // pred_fallthru
      _
    %v30 = vld [vmem:[#allocation3] sm:$0xff]
    %s31 = scalar_lea.vmem [#allocation3], 8
    %v32 = vld [vmem:[%s31] sm:$0xff]
    %s33 = scalar_lea.vmem [#allocation3], 16
    %v34 = vld [vmem:[%s33] sm:$0xff]
    %s35 = scalar_lea.vmem [#allocation3], 24
    %v36 = vld [vmem:[%s35] sm:$0xff]
    %v37 = vmul.f32 %v32, %v32
    %v38 = vmul.f32 %v34, %v34
    %v39 = vadd.f32 %v37, %v38
    %v40 = vmul.f32 %v30, %v30
    %v41 = vadd.f32 %v39, %v40
    %vm42 = vcmp.lt.f32.partialorder %v41, 0.25
    %v43 = vmul.f32 %v36, -0.2
    %v44 = vmul.f32 %v43, 1.442695
    %v45 = vpow.pop %v44
    %v46 = vsub.f32 1.0, %v45
    %v47 = vmax.f32 %v46, 0.0
    %v48 = vmin.f32 %v47, 1.1
    %v49 = vmul.f32 %v48, 9.21024
    %v50 = vsub.f32 9.2103405, %v49
    %v51 = vadd.f32 %v49, 0.000100005
    %v52 = vsel %vm42, %v50, %v51
    %v53 = vlaneseq
    %v54 = vshrl.u32 %v53, 7
    %v55 = vlaneseq
    %v56 = vand.u32 %v55, 127
    %s57 = smul.u32 0, 1024
    %v58 = vmul.u32 %v54, 128
    %v59 = vstv %s57
    %v60 = vadd.s32 %v59, %v58
    %v61 = vadd.s32 %v60, %v56
    %vm62 = vcmp.lt.s32.totalorder %v61, 256
    %v63 = vsel %vm62, %v52, 0.0
    %v64 = vld [vmem:[#allocation2] sm:$0xff]
    %v65 = vadd.f32 %v64, %v63
    %66 = vst [vmem:[#allocation2] sm:$0xff] %v65
    // Predicated region
    $region14: #{tpu_custom_call.1} parent=1 // pred_check
      %p67 = pneg %p25
    $region15: #{tpu_custom_call.1} parent=1 // pred_check_branch
      %69 = sbr.rel (%p67) target = $region17
    $region16: #{tpu_custom_call.1} parent=1 // pred_region
      %v70 = vld [vmem:[#allocation2] sm:$0xff]
      %71 = vadd.xlane.f32.xlu0 %v70
      %v72 = vpop.xlane.xlu0 %71
      %v73 = vrot.slane %v72, 4
      %v74 = vadd.f32 %v72, %v73
      %v75 = vrot.slane %v74, 2
      %v76 = vadd.f32 %v74, %v75
      %v77 = vrot.slane %v76, 1
      %v78 = vadd.f32 %v76, %v77
      %s79 = vtos %v78
      %v80 = vstv %s79
      %vm81 = vcmask 0
      %82 = vst.msk [vmem:[#allocation6] sm:$0x1] %vm81, %v80
    $region17: #{tpu_custom_call.1} parent=1 // pred_fallthru
      _
    // Predicated region
    $region18: #{tpu_custom_call.1} parent=1 // pred_check
      _
    $region19: #{tpu_custom_call.1} parent=1 // pred_check_branch
      %84 = sbr.rel (0) target = $region21
    $region20: #{tpu_custom_call.1} parent=1 // pred_region
      %86 = vsyncadd [#allocation5], 0
      %s88 = sshll.u32 [#allocation6], 4
      %s89 = int_to_ptr.vmem [resolvable:$true] %s88
      %s90 = sshll.u32 %s1, 4
      %s91 = int_to_ptr.hbm [resolvable:$true] %s90
      %93 = dma.vmem_to_hbm [thread:$0]  %s89, 16, %s91, [#allocation5]
    $region21: #{tpu_custom_call.1} parent=1 // pred_fallthru
      _
    // Predicated region
    $region22: #{tpu_custom_call.1} parent=1 // pred_check
      _
    $region23: #{tpu_custom_call.1} parent=1 // pred_check_branch
      %95 = sbr.rel (0) target = $region25
    $region24: #{tpu_custom_call.1} parent=1 // pred_region
      %97 = dma.done [#allocation5], 16
    $region25: #{tpu_custom_call.1} parent=1 // pred_fallthru
      _
    %98 = vsyncpa [#allocation4], 1
    %99 = vsyncpa [#allocation5], 1

</llo_original>
